<compile_context>
chip_gen: v6e
topology: v6e:2x2x1
jax: 0.10.0
libtpu: 0.0.40
codegen_flags: <defaults>
</compile_context>

<pallas_src>
import functools

import jax
import jax.numpy as jnp
from jax.experimental import pallas as pl
from jax.experimental.pallas import tpu as pltpu


def _feature_model1_kernel(x_ref, m_ref, b_ref, o_ref):
    """One batch tile per grid step.

    x_ref: (TB, T*W) VMEM   flattened input tile (lane-dense: T*W on lanes)
    m_ref: (T*W, T)  VMEM   fused conv1∘deconv1∘Linear operator (VMEM-resident)
    b_ref: (1,)      SMEM   Linear bias
    o_ref: (TB, T)   VMEM   output tile (T on lanes; reshaped to (B, 1, T, 1) in wrapper)
    """
    y = jnp.dot(x_ref[...], m_ref[...], preferred_element_type=jnp.float32)
    o_ref[...] = (y + b_ref[0]).astype(o_ref.dtype)


def _build_fused_operator(conv_w, deconv_w, lin_w, T):
    """Fold conv1 (valid corr, (K,1)), deconv1 (transposed conv, (K,1)) and Linear(W->1)
    into a single (T*W, T) matrix.  Computed from the weights only — standard weight
    folding, amortized across all forward calls; no data-dependent compute is hoisted."""
    C, _, K, _ = conv_w.shape
    W = lin_w.shape[1]
    Hc = T - K + 1  # valid conv1 output length along time
    w1 = conv_w.reshape(C, K).astype(jnp.float32)     # (C, K)
    w2 = deconv_w.reshape(C, K).astype(jnp.float32)   # (C, K)
    wl = lin_w.reshape(W).astype(jnp.float32)         # (W,)

    h = jnp.arange(Hc)
    s = jnp.arange(T)
    t = jnp.arange(T)

    # Conv_c[h, s] = w1[c, s-h] for 0 <= s-h < K   (so conv_c = Conv_c @ x, per column)
    dc = s[None, :] - h[:, None]                                   # (Hc, T)
    conv_ops = jnp.where((dc >= 0) & (dc < K),
                         w1[:, jnp.clip(dc, 0, K - 1)], 0.0)       # (C, Hc, T)
    # Dec_c[t, h] = w2[c, t-h] for 0 <= t-h < K    (so dec = Σ_c Dec_c @ conv_c)
    dd = t[:, None] - h[None, :]                                   # (T, Hc)
    dec_ops = jnp.where((dd >= 0) & (dd < K),
                        w2[:, jnp.clip(dd, 0, K - 1)], 0.0)        # (C, T, Hc)

    A = jnp.einsum('cth,chs->ts', dec_ops, conv_ops)               # (T, T): dec = A @ x
    # M[s*W + w, t] = A[t, s] * wl[w]  so that  y = x.reshape(B, T*W) @ M
    M = (A.T[:, None, :] * wl[None, :, None]).reshape(T * W, T)
    return M


@functools.partial(jax.jit, static_argnames=("tb_max", "compute_dtype"))
def feature_model1_forward(x, conv_w, deconv_w, lin_w, lin_b, *,
                           tb_max=4096, compute_dtype=jnp.bfloat16):
    """x: (B, T, W) float32; returns (B, 1, T, 1) like the PyTorch module."""
    B, T, W = x.shape
    M = _build_fused_operator(conv_w, deconv_w, lin_w, T).astype(compute_dtype)  # (T*W, T)
    bias = lin_b.reshape(1).astype(jnp.float32)
    x_flat = x.reshape(B, T * W).astype(compute_dtype)             # lane-dense input

    # Batch tiling: single step for small B (block == full dim, no (8,) constraint);
    # otherwise TB rows per step (multiple of 8), batch padded to a whole number of tiles.
    if B <= tb_max:
        TB, B_pad = B, B
    else:
        TB = tb_max
        B_pad = pl.cdiv(B, TB) * TB
        x_flat = jnp.pad(x_flat, ((0, B_pad - B), (0, 0)))
    num_blocks = B_pad // TB

    itemsize = jnp.dtype(compute_dtype).itemsize
    cost = pl.CostEstimate(
        flops=2 * B_pad * T * W * T,
        transcendentals=0,
        bytes_accessed=(B_pad * T * W * itemsize          # x read
                        + T * W * T * itemsize            # M read (once)
                        + B_pad * T * 4))                 # out write (f32)

    out = pl.pallas_call(
        _feature_model1_kernel,
        out_shape=jax.ShapeDtypeStruct((B_pad, T), jnp.float32),
        grid=(num_blocks,),
        in_specs=[
            pl.BlockSpec((TB, T * W), lambda i: (i, 0)),            # batch-tiled x
            pl.BlockSpec((T * W, T), lambda i: (0, 0)),             # M stays resident
            pl.BlockSpec(memory_space=pltpu.MemorySpace.SMEM),      # 1-element bias
        ],
        out_specs=pl.BlockSpec((TB, T), lambda i: (i, 0)),
        compiler_params=pltpu.CompilerParams(
            dimension_semantics=("parallel",)),                     # v7x: shard B over both TCs
        cost_estimate=cost,
    )(x_flat, M, bias)
    return out[:B].reshape(B, 1, T, 1)


def _reference(x, conv_w, deconv_w, lin_w, lin_b):
    """Pure-JAX reference matching the PyTorch forward pass (conv biases are False)."""
    B, T, W = x.shape
    C, _, K, _ = conv_w.shape
    Hc = T - K + 1
    conv = jnp.zeros((B, C, Hc, W), jnp.float32)
    for k in range(K):
        conv = conv + conv_w[:, 0, k, 0][None, :, None, None] * x[:, None, k:k + Hc, :]
    dec = jnp.zeros((B, T, W), jnp.float32)
    for k in range(K):
        contrib = jnp.einsum('bchw,c->bhw', conv, deconv_w[:, 0, k, 0])
        dec = dec.at[:, k:k + Hc, :].add(contrib)
    y = jnp.einsum('bhw,w->bh', dec, lin_w[0]) + lin_b[0]
    return y[:, None, :, None]


if __name__ == "__main__":
    # Small shapes consistent with the module: featSize == sq_len, kernel=(K,1), channels=C
    B, T, featSize = 2, 16, 8
    C, K = 4, 8

    key = jax.random.PRNGKey(0)
    k_x, k_w1, k_w2, k_wl, k_b = jax.random.split(key, 5)

    x = jax.random.normal(k_x, (B, T, featSize), jnp.float32)

    # xavier_uniform-style init for conv1/deconv1 weights (C, 1, K, 1)
    bound = (6.0 / (K + C * K)) ** 0.5
    conv_w = jax.random.uniform(k_w1, (C, 1, K, 1), jnp.float32, -bound, bound)
    deconv_w = jax.random.uniform(k_w2, (C, 1, K, 1), jnp.float32, -bound, bound)
    # Linear(featSize, 1): PyTorch default U(-1/sqrt(featSize), 1/sqrt(featSize))
    lb = 1.0 / (featSize ** 0.5)
    lin_w = jax.random.uniform(k_wl, (1, featSize), jnp.float32, -lb, lb)
    lin_b = jax.random.uniform(k_b, (1,), jnp.float32, -lb, lb)

    out = feature_model1_forward(x, conv_w, deconv_w, lin_w, lin_b)
    out = jax.block_until_ready(out)

    ref = _reference(x, conv_w, deconv_w, lin_w, lin_b)
    assert out.shape == (B, 1, T, 1), out.shape
    # bf16 MXU inputs with f32 accumulation: tolerance loosened vs the f32 reference.
    assert jnp.allclose(out, ref, atol=2e-2, rtol=2e-2), float(jnp.max(jnp.abs(out - ref)))
    print("KERNEL_OK")
</pallas_src>

<mosaic_0001>
module attributes {stable_mosaic.version = 11 : i64} {
  func.func @_feature_model1_kernel(%arg0: i32, %arg1: memref<2x128xbf16, #tpu.memory_space<vmem>>, %arg2: memref<128x16xbf16, #tpu.memory_space<vmem>>, %arg3: memref<1xf32, #tpu.memory_space<smem>>, %arg4: memref<2x16xf32, #tpu.memory_space<vmem>>) attributes {dimension_semantics = [#tpu.dimension_semantics<parallel>], iteration_bounds = array<i64: 1>, scalar_prefetch = 0 : i64, scratch_operands = 0 : i64, tpu.core_type = #tpu.core_type<tc>, window_params = [{transform_indices = @transform_0, window_bounds = array<i64: 2, 128>}, {pipeline_mode = #tpu.pipeline_mode<synchronous>, transform_indices = @transform_1, window_bounds = array<i64: 128, 16>}, {transform_indices = @transform_2, window_bounds = array<i64: 1>}, {transform_indices = @transform_3, window_bounds = array<i64: 2, 16>}]} {
    %c0 = arith.constant 0 : index
    %c0_0 = arith.constant 0 : index
    %0 = vector.load %arg1[%c0, %c0_0] : memref<2x128xbf16, #tpu.memory_space<vmem>>, vector<2x128xbf16>
    %c0_1 = arith.constant 0 : index
    %c0_2 = arith.constant 0 : index
    %1 = vector.load %arg2[%c0_1, %c0_2] : memref<128x16xbf16, #tpu.memory_space<vmem>>, vector<128x16xbf16>
    %cst = arith.constant dense<0.000000e+00> : vector<2x16xf32>
    %2 = tpu.matmul %0, %1, %cst {dimension_numbers = #tpu.dot_dimension_numbers<[1], [0], [0], [1], [0, 0, 1, 1], [], []>} : vector<2x128xbf16>, vector<128x16xbf16>, vector<2x16xf32> -> vector<2x16xf32>
    %c0_3 = arith.constant 0 : index
    %3 = memref.load %arg3[%c0_3] : memref<1xf32, #tpu.memory_space<smem>>
    %4 = vector.broadcast %3 : f32 to vector<2x16xf32>
    %5 = arith.addf %2, %4 : vector<2x16xf32>
    %c0_4 = arith.constant 0 : index
    %c0_5 = arith.constant 0 : index
    %6 = vector.load %arg4[%c0_4, %c0_5] : memref<2x16xf32, #tpu.memory_space<vmem>>, vector<2x16xf32>
    tpu.vector_store %arg4[%c0_4, %c0_5], %5 {strides = array<i32>} : memref<2x16xf32, #tpu.memory_space<vmem>>, vector<2x16xf32>,
    return
  }
  func.func @transform_0(%arg0: i32) -> (i32, i32) {
    %c0_i32 = arith.constant 0 : i32
    %c0_i32_0 = arith.constant 0 : i32
    return %arg0, %c0_i32 : i32, i32
  }
  func.func @transform_1(%arg0: i32) -> (i32, i32) {
    %c0_i32 = arith.constant 0 : i32
    %c0_i32_0 = arith.constant 0 : i32
    %c0_i32_1 = arith.constant 0 : i32
    return %c0_i32, %c0_i32_0 : i32, i32
  }
  func.func @transform_2(%arg0: i32) -> i32 {
    %c0_i32 = arith.constant 0 : i32
    %c0_i32_0 = arith.constant 0 : i32
    return %c0_i32 : i32
  }
  func.func @transform_3(%arg0: i32) -> (i32, i32) {
    %c0_i32 = arith.constant 0 : i32
    %c0_i32_0 = arith.constant 0 : i32
    return %arg0, %c0_i32 : i32, i32
  }
}

</mosaic_0001>

<llo_original>
// kernel: feature_model1_forward.1
$region0: #{feature_model1_forward.1}
  #allocation0 [shape = 'u32[]', space=smem, size = 0x4, offset = 0x4, fixed_abs, tag = 'smem constant byte address 0x4 - core index']
  #allocation1 [shape = 'u32[144,128]{1,0:T(1,128)}', space=vmem, size = 0x12000, scoped, tag = 'internal scratch']
  #allocation2 [shape = 'f32[1]{0:T(128)S(6)}', space=smem, size = 0x200, scoped, tag = 'scoped memory for feature_model1_forward.1']
  %s0 = inlined_call_operand.vmem [shape: bf16[2,128], index: 0, kind: input, shape index: {}]
  %s1 = inlined_call_operand.vmem [shape: bf16[128,16], index: 1, kind: input, shape index: {}]
  %s2 = inlined_call_operand.<no memory space> [shape: f32[1], index: 2, kind: input, shape index: {}]
  %s3 = inlined_call_operand.hbm [shape: f32[2,16], index: 3, kind: output, shape index: {}]
  %s4 = sld [smem:[#allocation0]]
  $region22: #{feature_model1_forward.1} parent=0
    _
  %s6 = ssub.s32 1, %s4
  %s7 = scalar_select 0, %s6, %s4
  %8 = sst [smem:[#allocation2]] %s2
  $region1: #{feature_model1_forward.1} parent=0
    #allocation3 [shape = 'u8[1024]{0}', space=vmem, size = 0x400, scoped, tag = 'output window, operand 0, single buffered']
    #allocation4 [shape = 's32[1]{0}', space=sflag, size = 0x4, scoped, tag = 'scoped memory for feature_model1_forward.1']
    %9 = vsyncpa [#allocation4], 0
    // Predicated region
    $region2: #{feature_model1_forward.1} parent=1 // pred_check
      _
    $region3: #{feature_model1_forward.1} parent=1 // pred_check_branch
      %11 = sbr.rel (0) target = $region5
    $region4: #{feature_model1_forward.1} parent=1 // pred_region
      _
    $region5: #{feature_model1_forward.1} parent=1 // pred_fallthru
      _
    // Predicated region
    $region6: #{feature_model1_forward.1} parent=1 // pred_check
      _
    $region7: #{feature_model1_forward.1} parent=1 // pred_check_branch
      %13 = sbr.rel (0) target = $region9
    $region8: #{feature_model1_forward.1} parent=1 // pred_region
      _
    $region9: #{feature_model1_forward.1} parent=1 // pred_fallthru
      _
    // Predicated region
    $region10: #{feature_model1_forward.1} parent=1 // pred_check
      _
    $region11: #{feature_model1_forward.1} parent=1 // pred_check_branch
      %15 = sbr.rel (0) target = $region13
    $region12: #{feature_model1_forward.1} parent=1 // pred_region
      _
    $region13: #{feature_model1_forward.1} parent=1 // pred_fallthru
      _
    %v17 = vld [vmem:[%s0] sm:$0x1]
    %v18 = vld [vmem:[%s1] sm:$0xf]
    %v19 = vld [vmem:[%s1 + $0x4] sm:$0xf]
    %v20 = vld [vmem:[%s1 + $0x8] sm:$0xf]
    %v21 = vld [vmem:[%s1 + $0xc] sm:$0xf]
    %v22 = vld [vmem:[%s1 + $0x10] sm:$0xf]
    %v23 = vld [vmem:[%s1 + $0x14] sm:$0xf]
    %v24 = vld [vmem:[%s1 + $0x18] sm:$0xf]
    %v25 = vld [vmem:[%s1 + $0x1c] sm:$0xf]
    %v26 = vld [vmem:[%s1 + $0x20] sm:$0xf]
    %v27 = vld [vmem:[%s1 + $0x24] sm:$0xf]
    %v28 = vld [vmem:[%s1 + $0x28] sm:$0xf]
    %v29 = vld [vmem:[%s1 + $0x2c] sm:$0xf]
    %v30 = vld [vmem:[%s1 + $0x30] sm:$0xf]
    %v31 = vld [vmem:[%s1 + $0x34] sm:$0xf]
    %v32 = vld [vmem:[%s1 + $0x38] sm:$0xf]
    %v33 = vld [vmem:[%s1 + $0x3c] sm:$0xf]
    %s34 = sld [smem:[#allocation2]]
    %v35 = vstv %s34
    %v52 = vunpack.c.l.b16 %v18
    %v53 = vunpack.c.l.b16 %v19
    %v54 = vunpack.c.l.b16 %v20
    %v55 = vunpack.c.l.b16 %v21
    %v56 = vunpack.c.l.b16 %v22
    %v57 = vunpack.c.l.b16 %v23
    %v58 = vunpack.c.l.b16 %v24
    %v59 = vunpack.c.l.b16 %v25
    %v60 = vunpack.c.l.b16 %v26
    %v61 = vunpack.c.l.b16 %v27
    %v62 = vunpack.c.l.b16 %v28
    %v63 = vunpack.c.l.b16 %v29
    %v64 = vunpack.c.l.b16 %v30
    %v65 = vunpack.c.l.b16 %v31
    %v66 = vunpack.c.l.b16 %v32
    %v67 = vunpack.c.l.b16 %v33
    %v68 = vpack.c.b16 %v53, %v52
    %v69 = vpack.c.b16 %v55, %v54
    %v70 = vpack.c.b16 %v57, %v56
    %v71 = vpack.c.b16 %v59, %v58
    %v72 = vpack.c.b16 %v61, %v60
    %v73 = vpack.c.b16 %v63, %v62
    %v74 = vpack.c.b16 %v65, %v64
    %v75 = vpack.c.b16 %v67, %v66
    %84 = vmatprep.subr.bf16.mxu0 0
    %85 = vmatpush1.bf16.msra.mxu0 %v75
    %86 = vmatprep.subr.bf16.mxu0 0
    %87 = vmatpush1.bf16.msra.mxu0 %v74
    %88 = vmatprep.subr.bf16.mxu0 0
    %89 = vmatpush1.bf16.msra.mxu0 %v73
    %90 = vmatprep.subr.bf16.mxu0 0
    %91 = vmatpush1.bf16.msra.mxu0 %v72
    %92 = vmatprep.subr.bf16.mxu0 0
    %93 = vmatpush1.bf16.msra.mxu0 %v71
    %94 = vmatprep.subr.bf16.mxu0 0
    %95 = vmatpush1.bf16.msra.mxu0 %v70
    %96 = vmatprep.subr.bf16.mxu0 0
    %97 = vmatpush1.bf16.msra.mxu0 %v69
    %98 = vmatprep.subr.bf16.mxu0 0
    %99 = vmatpush1.bf16.msra.mxu0 %v68
    %100 = vmatprep.subr.bf16.mxu0 0
    %101 = vmatpush2.bf16.msra.mxu0 0
    %102 = vmatprep.subr.bf16.mxu0 0
    %103 = vmatpush2.bf16.msra.mxu0 0
    %104 = vmatprep.subr.bf16.mxu0 0
    %105 = vmatpush2.bf16.msra.mxu0 0
    %106 = vmatprep.subr.bf16.mxu0 0
    %107 = vmatpush2.bf16.msra.mxu0 0
    %108 = vmatprep.subr.bf16.mxu0 0
    %109 = vmatpush2.bf16.msra.mxu0 0
    %110 = vmatprep.subr.bf16.mxu0 0
    %111 = vmatpush2.bf16.msra.mxu0 0
    %112 = vmatprep.subr.bf16.mxu0 0
    %113 = vmatpush2.bf16.msra.mxu0 0
    %114 = vmatprep.subr.bf16.mxu0 0
    %115 = vmatpush2.bf16.msra.mxu0 0
    %116 = vmatprep.mubr.bf16.mxu0 0
    %117 = vmatmul.mubr.bf16.gmra.mxu0 %v17
    %v118 = vpop.f32.mrf.mxu0
    %v119 = vadd.f32 %v35, %v118
    %v120 = vpop.f32.mrf.mxu0
    %v121 = vpop.f32.mrf.mxu0
    %v122 = vpop.f32.mrf.mxu0
    %123 = vdwg.mxu0
    %vm124 = vcmask 123904
    %125 = vst.msk [vmem:[#allocation3] sm:$0x3] %vm124, %v119
    // Predicated region
    $region14: #{feature_model1_forward.1} parent=1 // pred_check
      _
    $region15: #{feature_model1_forward.1} parent=1 // pred_check_branch
      %127 = sbr.rel (0) target = $region17
    $region16: #{feature_model1_forward.1} parent=1 // pred_region
      %s129 = ssub.s32 32, 32
      %130 = vsyncadd [#allocation4], %s129
      %s132 = sshll.u32 [#allocation3], 4
      %s133 = int_to_ptr.vmem [resolvable:$true] %s132
      %135 = dma.vmem_to_hbm [thread:$0]  %s133, 32, %s3, [#allocation4]
    $region17: #{feature_model1_forward.1} parent=1 // pred_fallthru
      _
    // Predicated region
    $region18: #{feature_model1_forward.1} parent=1 // pred_check
      _
    $region19: #{feature_model1_forward.1} parent=1 // pred_check_branch
      %137 = sbr.rel (0) target = $region21
    $region20: #{feature_model1_forward.1} parent=1 // pred_region
      %138 = dma.done [#allocation4], 32
    $region21: #{feature_model1_forward.1} parent=1 // pred_fallthru
      _
    %139 = vsyncpa [#allocation4], 1

</llo_original>
